<compile_context>
chip_gen: v6e
topology: v6e:2x2x1
jax: 0.10.0
libtpu: 0.0.40
codegen_flags: <defaults>
</compile_context>

<pallas_src>
import functools

import jax
import jax.numpy as jnp
from jax.experimental import pallas as pl
from jax.experimental.pallas import tpu as pltpu

LANE = 128
# ~512 rows x 128 (lane-padded) f32 per channel per block (~1.3 MiB / 5-channel
# input block).  Throughput saturates around 512-1024 rows; bigger tiles only
# eat VMEM / pipelining headroom (v7x has 64 MiB per TensorCore).
_BLOCK_ELEMS = 512 * LANE


def _cdiv(a, b):
    return -(-a // b)


def _pick_row_tile(rows_total, cols):
    """Balanced row tile: multiple of 8 (or full extent), ~equal-sized blocks."""
    cols_padded = _cdiv(cols, LANE) * LANE          # lane-layout footprint
    cap = max(8, (_BLOCK_ELEMS // cols_padded) // 8 * 8)
    if rows_total <= cap:
        return rows_total, 1, False                 # single block, no mask
    nblk = _cdiv(rows_total, cap)
    tr = _cdiv(_cdiv(rows_total, nblk), 8) * 8
    num_r = _cdiv(rows_total, tr)
    return tr, num_r, (num_r * tr != rows_total)


def _loss_kernel(out_ref, gt_ref, part_ref, acc_ref,
                 *, rows_total, tr, cols, needs_mask):
    """Grid = (N, num_r); n is 'parallel' (megacore split), r is 'arbitrary'.

    out_ref/gt_ref : f32[1, 5, tr, cols]   (lane-dense when cols == 128)
    part_ref       : f32[1, 3, cols]       per-n partial sums (written on last r)
    acc_ref        : f32[3, tr, cols]      VMEM accumulator [bce, giou, count]
    """
    r = pl.program_id(1)

    @pl.when(r == 0)
    def _():
        acc_ref[...] = jnp.zeros_like(acc_ref)

    # ---- BCEWithLogits on channel 4 (numerically stable formulation) ----
    x = out_ref[0, 4].astype(jnp.float32)            # (tr, cols)
    y = gt_ref[0, 4].astype(jnp.float32)
    bce = jnp.maximum(x, 0.0) - x * y + jnp.log(1.0 + jnp.exp(-jnp.abs(x)))

    # ---- GIoU on channels 0..3, filtered by (g_l > 0) ----
    o_l = out_ref[0, 0].astype(jnp.float32)
    o_t = out_ref[0, 1].astype(jnp.float32)
    o_r = out_ref[0, 2].astype(jnp.float32)
    o_b = out_ref[0, 3].astype(jnp.float32)
    g_l = gt_ref[0, 0].astype(jnp.float32)
    g_t = gt_ref[0, 1].astype(jnp.float32)
    g_r = gt_ref[0, 2].astype(jnp.float32)
    g_b = gt_ref[0, 3].astype(jnp.float32)
    gmask = g_l > 0.0

    if needs_mask:
        # Only the last row-block can read past rows_total, and lanes are the
        # full array extent, so a row-granular compare is sufficient.
        row = jax.lax.broadcasted_iota(jnp.int32, (tr, cols), 0)
        valid = (r * tr + row) < rows_total
        bce = jnp.where(valid, bce, 0.0)
        gmask = gmask & valid

    o_a = (o_t + o_b) * (o_l + o_r)
    g_a = (g_t + g_b) * (g_l + g_r)
    iw = jnp.minimum(o_l, g_l) + jnp.minimum(o_r, g_r)
    ih = jnp.minimum(o_t, g_t) + jnp.minimum(o_b, g_b)
    inter = iw * ih
    union = o_a + g_a - inter
    # approx reciprocal -> EUP slot (idle here); saves VALU Newton refinement.
    iou = inter * pl.reciprocal(union + 1e-9, approx=True)
    cw = jnp.maximum(o_l, g_l) + jnp.maximum(o_r, g_r)
    ch = jnp.maximum(o_t, g_t) + jnp.maximum(o_b, g_b)
    c_area = cw * ch
    giou = iou - (c_area - union) * pl.reciprocal(c_area + 1e-9, approx=True)
    loss_el = 1.0 - giou

    acc_ref[0] += bce
    acc_ref[1] += jnp.where(gmask, loss_el, 0.0)
    acc_ref[2] += jnp.where(gmask, 1.0, 0.0)

    # ---- per-n finalize: reduce over rows, emit (3, cols) lane-partials ----
    @pl.when(r == pl.num_programs(1) - 1)
    def _():
        part_ref[0, 0:1, :] = jnp.sum(acc_ref[0], axis=0, keepdims=True)
        part_ref[0, 1:2, :] = jnp.sum(acc_ref[1], axis=0, keepdims=True)
        part_ref[0, 2:3, :] = jnp.sum(acc_ref[2], axis=0, keepdims=True)


def loss_forward(out, gt):
    """out, gt: (N, 5, H, W) float32 (NCHW).  Returns (loss, loss_c, loss_r)."""
    N, C, H, W = out.shape
    assert C == 5 and gt.shape == out.shape
    S = H * W

    # Zero-copy views only (no jnp.pad, no prefix slice of the big tensors).
    if S % LANE == 0:
        rows_total, cols = S // LANE, LANE
        o4 = out.reshape(N, C, rows_total, cols)     # free bitcast, lane-dense
        g4 = gt.reshape(N, C, rows_total, cols)
    else:
        rows_total, cols = H, W                      # native NCHW layout
        o4, g4 = out, gt

    tr, num_r, needs_mask = _pick_row_tile(rows_total, cols)

    kernel = functools.partial(_loss_kernel, rows_total=rows_total, tr=tr,
                               cols=cols, needs_mask=needs_mask)

    cost = pl.CostEstimate(
        flops=50 * N * S,                 # ~45-50 VALU ops per spatial element
        transcendentals=2 * N * S,        # exp + log per element (BCE)
        bytes_accessed=2 * N * C * S * 4 + N * 3 * cols * 4,
    )

    partials = pl.pallas_call(
        kernel,
        out_shape=jax.ShapeDtypeStruct((N, 3, cols), jnp.float32),
        grid_spec=pltpu.PrefetchScalarGridSpec(
            num_scalar_prefetch=0,
            grid=(N, num_r),
            in_specs=[
                pl.BlockSpec((1, C, tr, cols), lambda n, r: (n, 0, r, 0)),
                pl.BlockSpec((1, C, tr, cols), lambda n, r: (n, 0, r, 0)),
            ],
            out_specs=pl.BlockSpec((1, 3, cols), lambda n, r: (n, 0, 0)),
            scratch_shapes=[pltpu.VMEM((3, tr, cols), jnp.float32)],
        ),
        compiler_params=pltpu.CompilerParams(
            dimension_semantics=("parallel", "arbitrary"),
            vmem_limit_bytes=32 * 1024 * 1024),
        cost_estimate=cost,
    )(o4, g4)

    # Final tiny reductions / divides in plain JAX (per-n, per-lane partials).
    bce_sum = jnp.sum(partials[:, 0, :])
    giou_sum = jnp.sum(partials[:, 1, :])
    cnt = jnp.sum(partials[:, 2, :])
    loss_c = bce_sum / jnp.float32(N * S)
    # NOTE: matches PyTorch/reference semantics: if no g_l > 0 anywhere, loss_r is NaN.
    loss_r = giou_sum / cnt
    return loss_c + loss_r, loss_c, loss_r


def loss_reference(out, gt):
    """Pure-JAX reference mirroring the PyTorch module."""
    x = out[:, 4]
    y = gt[:, 4]
    bce = jnp.maximum(x, 0.0) - x * y + jnp.log(1.0 + jnp.exp(-jnp.abs(x)))
    loss_c = jnp.mean(bce)

    o_l, o_t, o_r, o_b = out[:, 0], out[:, 1], out[:, 2], out[:, 3]
    g_l, g_t, g_r, g_b = gt[:, 0], gt[:, 1], gt[:, 2], gt[:, 3]
    mask = g_l > 0
    o_a = (o_t + o_b) * (o_l + o_r)
    g_a = (g_t + g_b) * (g_l + g_r)
    iw = jnp.minimum(o_l, g_l) + jnp.minimum(o_r, g_r)
    ih = jnp.minimum(o_t, g_t) + jnp.minimum(o_b, g_b)
    inter = iw * ih
    union = o_a + g_a - inter
    iou = inter / (union + 1e-9)
    cw = jnp.maximum(o_l, g_l) + jnp.maximum(o_r, g_r)
    ch = jnp.maximum(o_t, g_t) + jnp.maximum(o_b, g_b)
    c_area = cw * ch
    giou = iou - (c_area - union) / (c_area + 1e-9)
    loss_el = 1.0 - giou
    loss_r = jnp.sum(jnp.where(mask, loss_el, 0.0)) / jnp.sum(mask.astype(jnp.float32))
    return loss_c + loss_r, loss_c, loss_r


def _make_inputs(key, N, H, W):
    kb1, kb2, kc1, kc2 = jax.random.split(key, 4)
    out_boxes = jnp.abs(jax.random.normal(kb1, (N, 4, H, W), dtype=jnp.float32)) + 0.1
    out_logit = jax.random.normal(kc1, (N, 1, H, W), dtype=jnp.float32)
    out = jnp.concatenate([out_boxes, out_logit], axis=1)
    gt_boxes = jax.random.uniform(kb2, (N, 4, H, W), minval=-0.5, maxval=1.5,
                                  dtype=jnp.float32)
    gt_cls = jax.random.bernoulli(kc2, 0.5, (N, 1, H, W)).astype(jnp.float32)
    gt = jnp.concatenate([gt_boxes, gt_cls], axis=1)
    return out, gt


def _check(name, got, want, rtol, atol):
    assert jnp.allclose(got, want, rtol=rtol, atol=atol), (name, got, want)


def _run_case(key, N, H, W):
    out, gt = _make_inputs(key, N=N, H=H, W=W)
    loss, lc, lr = loss_forward(out, gt)
    jax.block_until_ready(loss)
    r_loss, r_lc, r_lr = loss_reference(out, gt)
    # loss_c has no approx math -> tight; loss_r/loss use approx reciprocals
    # (relative shift ~2^-12) -> slightly relaxed tolerance.
    _check("loss_c", lc, r_lc, rtol=1e-4, atol=1e-5)
    _check("loss_r", lr, r_lr, rtol=1e-3, atol=1e-4)
    _check("loss", loss, r_loss, rtol=1e-3, atol=1e-4)


if __name__ == "__main__":
    key = jax.random.PRNGKey(0)
    k1, k2, k3, k4 = jax.random.split(key, 4)

    # 1) H*W % 128 == 0, single row-block, no mask, 2-way parallel N.
    _run_case(k1, N=2, H=16, W=16)
    # 2) H*W % 128 != 0 -> native (N,5,H,W) layout path (no pad, no tail fixup).
    _run_case(k2, N=1, H=12, W=12)
    # 3) unaligned + multiple row-blocks + row mask (rows_total=1040, tr=352).
    _run_case(k3, N=2, H=1040, W=20)
    # 4) aligned + multiple row-blocks + row mask (rows_total=1040, cols=128).
    _run_case(k4, N=1, H=1040, W=128)

    print("KERNEL_OK")
</pallas_src>

<mosaic_0001>
module attributes {stable_mosaic.version = 11 : i64} {
  func.func @_loss_kernel(%arg0: i32, %arg1: i32, %arg2: memref<1x5x2x128xf32, #tpu.memory_space<vmem>>, %arg3: memref<1x5x2x128xf32, #tpu.memory_space<vmem>>, %arg4: memref<1x3x128xf32, #tpu.memory_space<vmem>>, %arg5: memref<3x2x128xf32, #tpu.memory_space<vmem>>) attributes {dimension_semantics = [#tpu.dimension_semantics<parallel>, #tpu.dimension_semantics<arbitrary>], iteration_bounds = array<i64: 2, 1>, scalar_prefetch = 0 : i64, scratch_operands = 1 : i64, tpu.core_type = #tpu.core_type<tc>, window_params = [{transform_indices = @transform_0, window_bounds = array<i64: 1, 5, 2, 128>}, {transform_indices = @transform_1, window_bounds = array<i64: 1, 5, 2, 128>}, {transform_indices = @transform_2, window_bounds = array<i64: 1, 3, 128>}]} {
    %c0_i32 = arith.constant 0 : i32
    %0 = arith.cmpi eq, %arg1, %c0_i32 : i32
    %1 = arith.extui %0 : i1 to i32
    %c0_i32_0 = arith.constant 0 : i32
    %2 = arith.cmpi ne, %1, %c0_i32_0 : i32
    scf.if %2 {
      %cst_65 = arith.constant 0.000000e+00 : f32
      %97 = vector.broadcast %cst_65 : f32 to vector<3x2x128xf32>
      %c0_66 = arith.constant 0 : index
      %c0_67 = arith.constant 0 : index
      %c0_68 = arith.constant 0 : index
      %98 = vector.load %arg5[%c0_66, %c0_67, %c0_68] : memref<3x2x128xf32, #tpu.memory_space<vmem>>, vector<3x2x128xf32>
      tpu.vector_store %arg5[%c0_66, %c0_67, %c0_68], %97 {strides = array<i32>} : memref<3x2x128xf32, #tpu.memory_space<vmem>>, vector<3x2x128xf32>,
    } else {
    }
    %c0 = arith.constant 0 : index
    %c4 = arith.constant 4 : index
    %c0_1 = arith.constant 0 : index
    %c0_2 = arith.constant 0 : index
    %3 = vector.load %arg2[%c0, %c4, %c0_1, %c0_2] : memref<1x5x2x128xf32, #tpu.memory_space<vmem>>, vector<1x1x2x128xf32>
    %4 = vector.shape_cast %3 : vector<1x1x2x128xf32> to vector<2x128xf32>
    %c0_3 = arith.constant 0 : index
    %c4_4 = arith.constant 4 : index
    %c0_5 = arith.constant 0 : index
    %c0_6 = arith.constant 0 : index
    %5 = vector.load %arg3[%c0_3, %c4_4, %c0_5, %c0_6] : memref<1x5x2x128xf32, #tpu.memory_space<vmem>>, vector<1x1x2x128xf32>
    %6 = vector.shape_cast %5 : vector<1x1x2x128xf32> to vector<2x128xf32>
    %cst = arith.constant 0.000000e+00 : f32
    %7 = vector.broadcast %cst : f32 to vector<2x128xf32>
    %8 = arith.maximumf %4, %7 : vector<2x128xf32>
    %9 = arith.mulf %4, %6 : vector<2x128xf32>
    %10 = arith.subf %8, %9 : vector<2x128xf32>
    %11 = math.absf %4 : vector<2x128xf32>
    %cst_7 = arith.constant 0.000000e+00 : f32
    %12 = vector.broadcast %cst_7 : f32 to vector<2x128xf32>
    %13 = arith.subf %12, %11 : vector<2x128xf32>
    %14 = math.exp %13 : vector<2x128xf32>
    %cst_8 = arith.constant 1.000000e+00 : f32
    %15 = vector.broadcast %cst_8 : f32 to vector<2x128xf32>
    %16 = arith.addf %15, %14 : vector<2x128xf32>
    %17 = math.log %16 : vector<2x128xf32>
    %18 = arith.addf %10, %17 : vector<2x128xf32>
    %c0_9 = arith.constant 0 : index
    %c0_10 = arith.constant 0 : index
    %c0_11 = arith.constant 0 : index
    %c0_12 = arith.constant 0 : index
    %19 = vector.load %arg2[%c0_9, %c0_10, %c0_11, %c0_12] : memref<1x5x2x128xf32, #tpu.memory_space<vmem>>, vector<1x1x2x128xf32>
    %20 = vector.shape_cast %19 : vector<1x1x2x128xf32> to vector<2x128xf32>
    %c0_13 = arith.constant 0 : index
    %c1 = arith.constant 1 : index
    %c0_14 = arith.constant 0 : index
    %c0_15 = arith.constant 0 : index
    %21 = vector.load %arg2[%c0_13, %c1, %c0_14, %c0_15] : memref<1x5x2x128xf32, #tpu.memory_space<vmem>>, vector<1x1x2x128xf32>
    %22 = vector.shape_cast %21 : vector<1x1x2x128xf32> to vector<2x128xf32>
    %c0_16 = arith.constant 0 : index
    %c2 = arith.constant 2 : index
    %c0_17 = arith.constant 0 : index
    %c0_18 = arith.constant 0 : index
    %23 = vector.load %arg2[%c0_16, %c2, %c0_17, %c0_18] : memref<1x5x2x128xf32, #tpu.memory_space<vmem>>, vector<1x1x2x128xf32>
    %24 = vector.shape_cast %23 : vector<1x1x2x128xf32> to vector<2x128xf32>
    %c0_19 = arith.constant 0 : index
    %c3 = arith.constant 3 : index
    %c0_20 = arith.constant 0 : index
    %c0_21 = arith.constant 0 : index
    %25 = vector.load %arg2[%c0_19, %c3, %c0_20, %c0_21] : memref<1x5x2x128xf32, #tpu.memory_space<vmem>>, vector<1x1x2x128xf32>
    %26 = vector.shape_cast %25 : vector<1x1x2x128xf32> to vector<2x128xf32>
    %c0_22 = arith.constant 0 : index
    %c0_23 = arith.constant 0 : index
    %c0_24 = arith.constant 0 : index
    %c0_25 = arith.constant 0 : index
    %27 = vector.load %arg3[%c0_22, %c0_23, %c0_24, %c0_25] : memref<1x5x2x128xf32, #tpu.memory_space<vmem>>, vector<1x1x2x128xf32>
    %28 = vector.shape_cast %27 : vector<1x1x2x128xf32> to vector<2x128xf32>
    %c0_26 = arith.constant 0 : index
    %c1_27 = arith.constant 1 : index
    %c0_28 = arith.constant 0 : index
    %c0_29 = arith.constant 0 : index
    %29 = vector.load %arg3[%c0_26, %c1_27, %c0_28, %c0_29] : memref<1x5x2x128xf32, #tpu.memory_space<vmem>>, vector<1x1x2x128xf32>
    %30 = vector.shape_cast %29 : vector<1x1x2x128xf32> to vector<2x128xf32>
    %c0_30 = arith.constant 0 : index
    %c2_31 = arith.constant 2 : index
    %c0_32 = arith.constant 0 : index
    %c0_33 = arith.constant 0 : index
    %31 = vector.load %arg3[%c0_30, %c2_31, %c0_32, %c0_33] : memref<1x5x2x128xf32, #tpu.memory_space<vmem>>, vector<1x1x2x128xf32>
    %32 = vector.shape_cast %31 : vector<1x1x2x128xf32> to vector<2x128xf32>
    %c0_34 = arith.constant 0 : index
    %c3_35 = arith.constant 3 : index
    %c0_36 = arith.constant 0 : index
    %c0_37 = arith.constant 0 : index
    %33 = vector.load %arg3[%c0_34, %c3_35, %c0_36, %c0_37] : memref<1x5x2x128xf32, #tpu.memory_space<vmem>>, vector<1x1x2x128xf32>
    %34 = vector.shape_cast %33 : vector<1x1x2x128xf32> to vector<2x128xf32>
    %cst_38 = arith.constant 0.000000e+00 : f32
    %35 = vector.broadcast %cst_38 : f32 to vector<2x128xf32>
    %36 = arith.cmpf ogt, %28, %35 : vector<2x128xf32>
    %37 = arith.addf %22, %26 : vector<2x128xf32>
    %38 = arith.addf %20, %24 : vector<2x128xf32>
    %39 = arith.mulf %37, %38 : vector<2x128xf32>
    %40 = arith.addf %30, %34 : vector<2x128xf32>
    %41 = arith.addf %28, %32 : vector<2x128xf32>
    %42 = arith.mulf %40, %41 : vector<2x128xf32>
    %43 = arith.minimumf %20, %28 : vector<2x128xf32>
    %44 = arith.minimumf %24, %32 : vector<2x128xf32>
    %45 = arith.addf %43, %44 : vector<2x128xf32>
    %46 = arith.minimumf %22, %30 : vector<2x128xf32>
    %47 = arith.minimumf %26, %34 : vector<2x128xf32>
    %48 = arith.addf %46, %47 : vector<2x128xf32>
    %49 = arith.mulf %45, %48 : vector<2x128xf32>
    %50 = arith.addf %39, %42 : vector<2x128xf32>
    %51 = arith.subf %50, %49 : vector<2x128xf32>
    %cst_39 = arith.constant 9.99999971E-10 : f32
    %52 = vector.broadcast %cst_39 : f32 to vector<2x128xf32>
    %53 = arith.addf %51, %52 : vector<2x128xf32>
    %54 = tpu.reciprocal %53 {approx = true} : vector<2x128xf32> -> vector<2x128xf32>
    %55 = arith.mulf %49, %54 : vector<2x128xf32>
    %56 = arith.maximumf %20, %28 : vector<2x128xf32>
    %57 = arith.maximumf %24, %32 : vector<2x128xf32>
    %58 = arith.addf %56, %57 : vector<2x128xf32>
    %59 = arith.maximumf %22, %30 : vector<2x128xf32>
    %60 = arith.maximumf %26, %34 : vector<2x128xf32>
    %61 = arith.addf %59, %60 : vector<2x128xf32>
    %62 = arith.mulf %58, %61 : vector<2x128xf32>
    %63 = arith.subf %62, %51 : vector<2x128xf32>
    %cst_40 = arith.constant 9.99999971E-10 : f32
    %64 = vector.broadcast %cst_40 : f32 to vector<2x128xf32>
    %65 = arith.addf %62, %64 : vector<2x128xf32>
    %66 = tpu.reciprocal %65 {approx = true} : vector<2x128xf32> -> vector<2x128xf32>
    %67 = arith.mulf %63, %66 : vector<2x128xf32>
    %68 = arith.subf %55, %67 : vector<2x128xf32>
    %cst_41 = arith.constant 1.000000e+00 : f32
    %69 = vector.broadcast %cst_41 : f32 to vector<2x128xf32>
    %70 = arith.subf %69, %68 : vector<2x128xf32>
    %c0_42 = arith.constant 0 : index
    %c0_43 = arith.constant 0 : index
    %c0_44 = arith.constant 0 : index
    %71 = vector.load %arg5[%c0_42, %c0_43, %c0_44] : memref<3x2x128xf32, #tpu.memory_space<vmem>>, vector<1x2x128xf32>
    %72 = vector.shape_cast %71 : vector<1x2x128xf32> to vector<2x128xf32>
    %73 = arith.addf %72, %18 : vector<2x128xf32>
    %c0_45 = arith.constant 0 : index
    %c0_46 = arith.constant 0 : index
    %c0_47 = arith.constant 0 : index
    %74 = vector.load %arg5[%c0_45, %c0_46, %c0_47] : memref<3x2x128xf32, #tpu.memory_space<vmem>>, vector<1x2x128xf32>
    %75 = vector.shape_cast %74 : vector<1x2x128xf32> to vector<2x128xf32>
    %76 = vector.shape_cast %73 : vector<2x128xf32> to vector<1x2x128xf32>
    tpu.vector_store %arg5[%c0_45, %c0_46, %c0_47], %76 {strides = array<i32>} : memref<3x2x128xf32, #tpu.memory_space<vmem>>, vector<1x2x128xf32>,
    %c1_48 = arith.constant 1 : index
    %c0_49 = arith.constant 0 : index
    %c0_50 = arith.constant 0 : index
    %77 = vector.load %arg5[%c1_48, %c0_49, %c0_50] : memref<3x2x128xf32, #tpu.memory_space<vmem>>, vector<1x2x128xf32>
    %78 = vector.shape_cast %77 : vector<1x2x128xf32> to vector<2x128xf32>
    %cst_51 = arith.constant 0.000000e+00 : f32
    %79 = vector.broadcast %cst_51 : f32 to vector<2x128xf32>
    %80 = arith.select %36, %70, %79 : vector<2x128xi1>, vector<2x128xf32>
    %81 = arith.addf %78, %80 : vector<2x128xf32>
    %c1_52 = arith.constant 1 : index
    %c0_53 = arith.constant 0 : index
    %c0_54 = arith.constant 0 : index
    %82 = vector.load %arg5[%c1_52, %c0_53, %c0_54] : memref<3x2x128xf32, #tpu.memory_space<vmem>>, vector<1x2x128xf32>
    %83 = vector.shape_cast %82 : vector<1x2x128xf32> to vector<2x128xf32>
    %84 = vector.shape_cast %81 : vector<2x128xf32> to vector<1x2x128xf32>
    tpu.vector_store %arg5[%c1_52, %c0_53, %c0_54], %84 {strides = array<i32>} : memref<3x2x128xf32, #tpu.memory_space<vmem>>, vector<1x2x128xf32>,
    %c2_55 = arith.constant 2 : index
    %c0_56 = arith.constant 0 : index
    %c0_57 = arith.constant 0 : index
    %85 = vector.load %arg5[%c2_55, %c0_56, %c0_57] : memref<3x2x128xf32, #tpu.memory_space<vmem>>, vector<1x2x128xf32>
    %86 = vector.shape_cast %85 : vector<1x2x128xf32> to vector<2x128xf32>
    %cst_58 = arith.constant 1.000000e+00 : f32
    %cst_59 = arith.constant 0.000000e+00 : f32
    %87 = vector.broadcast %cst_58 : f32 to vector<2x128xf32>
    %88 = vector.broadcast %cst_59 : f32 to vector<2x128xf32>
    %89 = arith.select %36, %87, %88 : vector<2x128xi1>, vector<2x128xf32>
    %90 = arith.addf %86, %89 : vector<2x128xf32>
    %c2_60 = arith.constant 2 : index
    %c0_61 = arith.constant 0 : index
    %c0_62 = arith.constant 0 : index
    %91 = vector.load %arg5[%c2_60, %c0_61, %c0_62] : memref<3x2x128xf32, #tpu.memory_space<vmem>>, vector<1x2x128xf32>
    %92 = vector.shape_cast %91 : vector<1x2x128xf32> to vector<2x128xf32>
    %93 = vector.shape_cast %90 : vector<2x128xf32> to vector<1x2x128xf32>
    tpu.vector_store %arg5[%c2_60, %c0_61, %c0_62], %93 {strides = array<i32>} : memref<3x2x128xf32, #tpu.memory_space<vmem>>, vector<1x2x128xf32>,
    %c0_i32_63 = arith.constant 0 : i32
    %94 = arith.cmpi eq, %arg1, %c0_i32_63 : i32
    %95 = arith.extui %94 : i1 to i32
    %c0_i32_64 = arith.constant 0 : i32
    %96 = arith.cmpi ne, %95, %c0_i32_64 : i32
    scf.if %96 {
      %c0_65 = arith.constant 0 : index
      %c0_66 = arith.constant 0 : index
      %c0_67 = arith.constant 0 : index
      %97 = vector.load %arg5[%c0_65, %c0_66, %c0_67] : memref<3x2x128xf32, #tpu.memory_space<vmem>>, vector<1x2x128xf32>
      %98 = vector.shape_cast %97 : vector<1x2x128xf32> to vector<2x128xf32>
      %cst_68 = arith.constant dense<0.000000e+00> : vector<128xf32>
      %99 = vector.multi_reduction <add>, %98, %cst_68 [0] : vector<2x128xf32> to vector<128xf32>
      %100 = vector.shape_cast %99 : vector<128xf32> to vector<1x128xf32>
      %c0_69 = arith.constant 0 : index
      %c0_70 = arith.constant 0 : index
      %c0_71 = arith.constant 0 : index
      %101 = vector.load %arg4[%c0_69, %c0_70, %c0_71] : memref<1x3x128xf32, #tpu.memory_space<vmem>>, vector<1x1x128xf32>
      %102 = vector.shape_cast %101 : vector<1x1x128xf32> to vector<1x128xf32>
      %103 = vector.shape_cast %100 : vector<1x128xf32> to vector<1x1x128xf32>
      tpu.vector_store %arg4[%c0_69, %c0_70, %c0_71], %103 {strides = array<i32>} : memref<1x3x128xf32, #tpu.memory_space<vmem>>, vector<1x1x128xf32>,
      %c1_72 = arith.constant 1 : index
      %c0_73 = arith.constant 0 : index
      %c0_74 = arith.constant 0 : index
      %104 = vector.load %arg5[%c1_72, %c0_73, %c0_74] : memref<3x2x128xf32, #tpu.memory_space<vmem>>, vector<1x2x128xf32>
      %105 = vector.shape_cast %104 : vector<1x2x128xf32> to vector<2x128xf32>
      %cst_75 = arith.constant dense<0.000000e+00> : vector<128xf32>
      %106 = vector.multi_reduction <add>, %105, %cst_75 [0] : vector<2x128xf32> to vector<128xf32>
      %107 = vector.shape_cast %106 : vector<128xf32> to vector<1x128xf32>
      %c0_76 = arith.constant 0 : index
      %c1_77 = arith.constant 1 : index
      %c0_78 = arith.constant 0 : index
      %108 = vector.load %arg4[%c0_76, %c1_77, %c0_78] : memref<1x3x128xf32, #tpu.memory_space<vmem>>, vector<1x1x128xf32>
      %109 = vector.shape_cast %108 : vector<1x1x128xf32> to vector<1x128xf32>
      %110 = vector.shape_cast %107 : vector<1x128xf32> to vector<1x1x128xf32>
      tpu.vector_store %arg4[%c0_76, %c1_77, %c0_78], %110 {strides = array<i32>} : memref<1x3x128xf32, #tpu.memory_space<vmem>>, vector<1x1x128xf32>,
      %c2_79 = arith.constant 2 : index
      %c0_80 = arith.constant 0 : index
      %c0_81 = arith.constant 0 : index
      %111 = vector.load %arg5[%c2_79, %c0_80, %c0_81] : memref<3x2x128xf32, #tpu.memory_space<vmem>>, vector<1x2x128xf32>
      %112 = vector.shape_cast %111 : vector<1x2x128xf32> to vector<2x128xf32>
      %cst_82 = arith.constant dense<0.000000e+00> : vector<128xf32>
      %113 = vector.multi_reduction <add>, %112, %cst_82 [0] : vector<2x128xf32> to vector<128xf32>
      %114 = vector.shape_cast %113 : vector<128xf32> to vector<1x128xf32>
      %c0_83 = arith.constant 0 : index
      %c2_84 = arith.constant 2 : index
      %c0_85 = arith.constant 0 : index
      %115 = vector.load %arg4[%c0_83, %c2_84, %c0_85] : memref<1x3x128xf32, #tpu.memory_space<vmem>>, vector<1x1x128xf32>
      %116 = vector.shape_cast %115 : vector<1x1x128xf32> to vector<1x128xf32>
      %117 = vector.shape_cast %114 : vector<1x128xf32> to vector<1x1x128xf32>
      tpu.vector_store %arg4[%c0_83, %c2_84, %c0_85], %117 {strides = array<i32>} : memref<1x3x128xf32, #tpu.memory_space<vmem>>, vector<1x1x128xf32>,
    } else {
    }
    return
  }
  func.func @transform_0(%arg0: i32, %arg1: i32) -> (i32, i32, i32, i32) {
    %c0_i32 = arith.constant 0 : i32
    %c0_i32_0 = arith.constant 0 : i32
    %c0_i32_1 = arith.constant 0 : i32
    return %arg0, %c0_i32, %arg1, %c0_i32_0 : i32, i32, i32, i32
  }
  func.func @transform_1(%arg0: i32, %arg1: i32) -> (i32, i32, i32, i32) {
    %c0_i32 = arith.constant 0 : i32
    %c0_i32_0 = arith.constant 0 : i32
    %c0_i32_1 = arith.constant 0 : i32
    return %arg0, %c0_i32, %arg1, %c0_i32_0 : i32, i32, i32, i32
  }
  func.func @transform_2(%arg0: i32, %arg1: i32) -> (i32, i32, i32) {
    %c0_i32 = arith.constant 0 : i32
    %c0_i32_0 = arith.constant 0 : i32
    %c0_i32_1 = arith.constant 0 : i32
    return %arg0, %c0_i32, %c0_i32_0 : i32, i32, i32
  }
}

</mosaic_0001>

<llo_original>
// kernel: tpu_custom_call.1
$region0: #{tpu_custom_call.1}
  #allocation0 [shape = 'u32[]', space=smem, size = 0x4, offset = 0x4, fixed_abs, tag = 'smem constant byte address 0x4 - core index']
  #allocation1 [shape = 'u32[144,128]{1,0:T(1,128)}', space=vmem, size = 0x12000, scoped, tag = 'internal scratch']
  #allocation2 [shape = 'f32[3,2,128]{2,1,0:T(2,128)}', space=vmem, size = 0xc00, scoped, tag = 'scratch operand']
  %s0 = inlined_call_operand.hbm [shape: f32[2,5,2,128], index: 0, kind: input, shape index: {}]
  %s1 = inlined_call_operand.hbm [shape: f32[2,5,2,128], index: 1, kind: input, shape index: {}]
  %s2 = inlined_call_operand.vmem [shape: f32[2,3,128], index: 2, kind: output, shape index: {}]
  %s3 = sld [smem:[#allocation0]]
  $region57: #{tpu_custom_call.1} parent=0
    _
  %s5 = ssub.s32 1, %s3
  %s6 = scalar_select 0, %s5, %s3
  $region1: #{tpu_custom_call.1} parent=0
    #allocation3 [shape = 'u8[10240]{0}', space=vmem, size = 0x2800, scoped, tag = 'input window, operand 0']
    #allocation4 [shape = 's32[2]{0}', space=sflag, size = 0x8, scoped, tag = 'scoped memory for tpu_custom_call.1']
    #allocation5 [shape = 'u8[10240]{0}', space=vmem, size = 0x2800, scoped, tag = 'input window, operand 1']
    #allocation6 [shape = 's32[2]{0}', space=sflag, size = 0x8, scoped, tag = 'scoped memory for tpu_custom_call.1']
    %7 = vsyncpa [#allocation4], 0
    %s8 = scalar_lea.sflag [#allocation4], 1
    %9 = vsyncpa %s8, 0
    %10 = vsyncpa [#allocation6], 0
    %s11 = scalar_lea.sflag [#allocation6], 1
    %12 = vsyncpa %s11, 0
    loop: start=0, step=1, limit=4
    $region2: #{tpu_custom_call.1} parent=1 // loop_pre_header
      _
    $region3: #{tpu_custom_call.1} parent=1 // loop_header
      %s14 = sphi 0, %s18
      %p15 = scmp.ge.s32.totalorder %s14, 4
      %s21 = sphi 0, %s33
      %s22 = sphi 0, %s29
      %s23 = sphi 0, %s21
      %s24 = sphi 0, %s22
      %s25 = sphi 0, %s23
      %s26 = sphi 0, %s24
      %s38 = sphi 0, %s40
      %s41 = sphi 0, %s38
      %s42 = sphi 0, %s41
      %s58 = sphi 0, %s42
      %s66 = sphi 0, %s68
      %s69 = sphi 0, %s66
      %s70 = sphi 0, %s69
      %s86 = sphi 0, %s70
      %s92 = sphi 0, %s94
      %s95 = sphi 0, %s92
      %s96 = sphi 0, %s95
      %s112 = sphi 0, %s96
    $region4: #{tpu_custom_call.1} parent=1 // loop_header_branch
      %17 = sbr.rel (%p15) target = $region8
    $region5: #{tpu_custom_call.1} parent=1 // loop_body
      %s19 = ssub.s32 %s14, 1
      %s20 = ssub.s32 %s14, 2
      %s27 = sadd.s32 1, %s22
      %p28 = scmp.ge.s32.totalorder %s27, 1
      %s29 = scalar_select %p28, 0, %s27
      %s30 = sadd.s32 1, %s21
      %s31 = scalar_select %p28, %s30, %s21
      %p32 = scmp.ge.s32.totalorder %s31, 2
      %s33 = scalar_select %p32, 0, %s31
      %s34 = ssub.s32 %s21, %s33
      %s35 = ssub.s32 %s22, %s29
      %s36 = sor.u32 %s34, %s35
      %p37 = scmp.eq.s32.totalorder %s36, 0
      %s39 = sadd.s32 %s38, 1
      %s40 = scalar_select %p37, %s38, %s39
      %p43 = pneg %p37
      %p44 = scmp.eq.s32.totalorder %s14, 1
      %p45 = por %p43, %p44
      %p46 = scmp.ne.s32.totalorder %s38, %s41
      %p47 = scmp.eq.s32.totalorder %s14, 0
      %p48 = por %p46, %p47
      %p49 = scmp.ne.s32.totalorder %s38, %s41
      %p50 = scmp.eq.s32.totalorder %s19, 1
      %p51 = por %p49, %p50
      %p52 = scmp.ne.s32.totalorder %s41, %s42
      %p53 = scmp.eq.s32.totalorder %s19, 0
      %p54 = por %p52, %p53
      %p55 = scmp.ne.s32.totalorder %s41, %s42
      %p56 = scmp.eq.s32.totalorder %s20, 1
      %p57 = por %p55, %p56
      %p59 = scmp.ne.s32.totalorder %s42, %s58
      %p60 = scmp.eq.s32.totalorder %s20, 0
      %p61 = por %p59, %p60
      %s62 = ssub.s32 %s21, %s33
      %s63 = ssub.s32 %s22, %s29
      %s64 = sor.u32 %s62, %s63
      %p65 = scmp.eq.s32.totalorder %s64, 0
      %s67 = sadd.s32 %s66, 1
      %s68 = scalar_select %p65, %s66, %s67
      %p71 = pneg %p65
      %p72 = scmp.eq.s32.totalorder %s14, 1
      %p73 = por %p71, %p72
      %p74 = scmp.ne.s32.totalorder %s66, %s69
      %p75 = scmp.eq.s32.totalorder %s14, 0
      %p76 = por %p74, %p75
      %p77 = scmp.ne.s32.totalorder %s66, %s69
      %p78 = scmp.eq.s32.totalorder %s19, 1
      %p79 = por %p77, %p78
      %p80 = scmp.ne.s32.totalorder %s69, %s70
      %p81 = scmp.eq.s32.totalorder %s19, 0
      %p82 = por %p80, %p81
      %p83 = scmp.ne.s32.totalorder %s69, %s70
      %p84 = scmp.eq.s32.totalorder %s20, 1
      %p85 = por %p83, %p84
      %p87 = scmp.ne.s32.totalorder %s70, %s86
      %p88 = scmp.eq.s32.totalorder %s20, 0
      %p89 = por %p87, %p88
      %s90 = ssub.s32 %s21, %s33
      %p91 = scmp.eq.s32.totalorder %s90, 0
      %s93 = sadd.s32 %s92, 1
      %s94 = scalar_select %p91, %s92, %s93
      %p97 = pneg %p91
      %p98 = scmp.eq.s32.totalorder %s14, 1
      %p99 = por %p97, %p98
      %p100 = scmp.ne.s32.totalorder %s92, %s95
      %p101 = scmp.eq.s32.totalorder %s14, 0
      %p102 = por %p100, %p101
      %p103 = scmp.ne.s32.totalorder %s92, %s95
      %p104 = scmp.eq.s32.totalorder %s19, 1
      %p105 = por %p103, %p104
      %p106 = scmp.ne.s32.totalorder %s95, %s96
      %p107 = scmp.eq.s32.totalorder %s19, 0
      %p108 = por %p106, %p107
      %p109 = scmp.ne.s32.totalorder %s95, %s96
      %p110 = scmp.eq.s32.totalorder %s20, 1
      %p111 = por %p109, %p110
      %p113 = scmp.ne.s32.totalorder %s96, %s112
      %p114 = scmp.eq.s32.totalorder %s20, 0
      %p115 = por %p113, %p114
      %p116 = scmp.le.s32.totalorder 1, %s14
      %p117 = scmp.lt.s32.totalorder %s14, 3
      %p118 = pnand %p116, %p117
      %p119 = pneg %p118
      // Predicated region
      $region9: #{tpu_custom_call.1} parent=5 // pred_check
        _
      $region10: #{tpu_custom_call.1} parent=5 // pred_check_branch
        %121 = sbr.rel (%p118) target = $region12
      $region11: #{tpu_custom_call.1} parent=5 // pred_region
        %s122 = ssub.s32 %s14, 1
      $region12: #{tpu_custom_call.1} parent=5 // pred_fallthru
        _
      %p123 = scmp.lt.s32.totalorder %s14, 2
      // Predicated region
      $region13: #{tpu_custom_call.1} parent=5 // pred_check
        %p124 = pneg %p123
      $region14: #{tpu_custom_call.1} parent=5 // pred_check_branch
        %126 = sbr.rel (%p124) target = $region16
      $region15: #{tpu_custom_call.1} parent=5 // pred_region
        // Predicated region
        $region17: #{tpu_custom_call.1} parent=15 // pred_check
          %p127 = pneg %p48
        $region18: #{tpu_custom_call.1} parent=15 // pred_check_branch
          %129 = sbr.rel (%p127) target = $region20
        $region19: #{tpu_custom_call.1} parent=15 // pred_region
          %s130 = sand.u32 %s38, 1
          %s131 = scalar_lea.sflag [#allocation4], %s130
          %s132 = sand.u32 %s38, 1
          %s133 = smul.addr %s132, 10
          %s134 = scalar_lea.vmem [#allocation3], %s133
          %s136 = ssub.s32 160, 160
          %137 = vsyncadd %s131, %s136
          %s138 = smul.addr %s21, 5
          %s139 = sadd.s32 %s22, %s138
          %s140 = smul.addr %s139, 32
          %s141 = scalar_lea.hbm %s0, %s140
          %s142 = sshll.u32 %s134, 4
          %s143 = int_to_ptr.vmem [resolvable:$true] %s142
          %148 = dma.hbm_to_vmem [thread:$0]  %s141, 160, %s143, %s131, 32, 32, 2
        $region20: #{tpu_custom_call.1} parent=15 // pred_fallthru
          _
        // Predicated region
        $region21: #{tpu_custom_call.1} parent=15 // pred_check
          %p149 = pneg %p76
        $region22: #{tpu_custom_call.1} parent=15 // pred_check_branch
          %151 = sbr.rel (%p149) target = $region24
        $region23: #{tpu_custom_call.1} parent=15 // pred_region
          %s152 = sand.u32 %s66, 1
          %s153 = scalar_lea.sflag [#allocation6], %s152
          %s154 = sand.u32 %s66, 1
          %s155 = smul.addr %s154, 10
          %s156 = scalar_lea.vmem [#allocation5], %s155
          %s158 = ssub.s32 160, 160
          %159 = vsyncadd %s153, %s158
          %s160 = smul.addr %s21, 5
          %s161 = sadd.s32 %s22, %s160
          %s162 = smul.addr %s161, 32
          %s163 = scalar_lea.hbm %s1, %s162
          %s164 = sshll.u32 %s156, 4
          %s165 = int_to_ptr.vmem [resolvable:$true] %s164
          %170 = dma.hbm_to_vmem [thread:$0]  %s163, 160, %s165, %s153, 32, 32, 2
        $region24: #{tpu_custom_call.1} parent=15 // pred_fallthru
          _
      $region16: #{tpu_custom_call.1} parent=5 // pred_fallthru
        _
      %p171 = scmp.le.s32.totalorder 1, %s14
      %p172 = scmp.lt.s32.totalorder %s14, 3
      %p173 = pnand %p171, %p172
      %p174 = pneg %p173
      // Predicated region
      $region25: #{tpu_custom_call.1} parent=5 // pred_check
        _
      $region26: #{tpu_custom_call.1} parent=5 // pred_check_branch
        %176 = sbr.rel (%p173) target = $region28
      $region27: #{tpu_custom_call.1} parent=5 // pred_region
        %s177 = ssub.s32 %s14, 1
        %s178 = sand.u32 %s41, 1
        %s179 = scalar_lea.sflag [#allocation4], %s178
        %s180 = sand.u32 %s41, 1
        %s181 = smul.addr %s180, 10
        %s182 = scalar_lea.vmem [#allocation3], %s181
        // Predicated region
        $region29: #{tpu_custom_call.1} parent=27 // pred_check
          %p183 = pneg %p54
        $region30: #{tpu_custom_call.1} parent=27 // pred_check_branch
          %185 = sbr.rel (%p183) target = $region32
        $region31: #{tpu_custom_call.1} parent=27 // pred_region
          %186 = dma.done %s179, 160
        $region32: #{tpu_custom_call.1} parent=27 // pred_fallthru
          _
        %s187 = sand.u32 %s69, 1
        %s188 = scalar_lea.sflag [#allocation6], %s187
        %s189 = sand.u32 %s69, 1
        %s190 = smul.addr %s189, 10
        %s191 = scalar_lea.vmem [#allocation5], %s190
        // Predicated region
        $region33: #{tpu_custom_call.1} parent=27 // pred_check
          %p192 = pneg %p82
        $region34: #{tpu_custom_call.1} parent=27 // pred_check_branch
          %194 = sbr.rel (%p192) target = $region36
        $region35: #{tpu_custom_call.1} parent=27 // pred_region
          %195 = dma.done %s188, 160
        $region36: #{tpu_custom_call.1} parent=27 // pred_fallthru
          _
        %s196 = sand.u32 %s41, 1
        %s197 = scalar_lea.sflag [#allocation4], %s196
        %s198 = sand.u32 %s41, 1
        %s199 = smul.addr %s198, 10
        %s200 = scalar_lea.vmem [#allocation3], %s199
        %p201 = pneg %p54
        %p202 = pneg %p51
        %s203 = sand.u32 %s69, 1
        %s204 = scalar_lea.sflag [#allocation6], %s203
        %s205 = sand.u32 %s69, 1
        %s206 = smul.addr %s205, 10
        %s207 = scalar_lea.vmem [#allocation5], %s206
        %p208 = pneg %p82
        %p209 = pneg %p79
        %p210 = pneg %p108
        %p211 = pneg %p105
        %p212 = scmp.lt.s32.totalorder %s23, 1
        %s213 = scalar_select %p212, %s23, 1
        %s214 = smul.addr %s213, 4
        %s215 = scalar_lea.vmem %s2, %s214
        %p216 = scmp.lt.s32.totalorder %s23, 1
        %s217 = scalar_select %p216, %s23, 1
        %s218 = smul.addr %s217, 4
        %s219 = scalar_lea.vmem %s2, %s218
        %p220 = scmp.eq.s32.totalorder %s24, 0
        // Predicated region
        $region37: #{tpu_custom_call.1} parent=27 // pred_check
          %p221 = pneg %p220
        $region38: #{tpu_custom_call.1} parent=27 // pred_check_branch
          %223 = sbr.rel (%p221) target = $region40
        $region39: #{tpu_custom_call.1} parent=27 // pred_region
          %224 = vst [vmem:[#allocation2] sm:$0x3] 0.0
          %225 = vst [vmem:[#allocation2 + $0x2] sm:$0x3] 0.0
          %226 = vst [vmem:[#allocation2 + $0x4] sm:$0x3] 0.0
        $region40: #{tpu_custom_call.1} parent=27 // pred_fallthru
          _
        %s227 = scalar_lea.vmem %s182, 8 [#allocation3]
        %v228 = vld [vmem:[%s227] sm:$0x3]
        %s229 = scalar_lea.vmem %s191, 8 [#allocation5]
        %v230 = vld [vmem:[%s229] sm:$0x3]
        %v231 = vmax.f32 %v228, 0.0
        %v232 = vmul.f32 %v228, %v230
        %v233 = vsub.f32 %v231, %v232
        %v234 = vand.u32 2147483647, %v228
        %v235 = vsub.f32 0.0, %v234
        %v236 = vmul.f32 %v235, 1.442695
        %v237 = vpow.pop %v236
        %v238 = vadd.f32 %v237, 1.0
        %v239 = vlog2.pop %v238
        %v240 = vmul.f32 %v239, 0.6931472
        %v241 = vadd.f32 %v233, %v240
        %v242 = vld [vmem:[%s182] sm:$0x3]
        %s243 = scalar_lea.vmem %s182, 2 [#allocation3]
        %v244 = vld [vmem:[%s243] sm:$0x3]
        %s245 = scalar_lea.vmem %s182, 4 [#allocation3]
        %v246 = vld [vmem:[%s245] sm:$0x3]
        %s247 = scalar_lea.vmem %s182, 6 [#allocation3]
        %v248 = vld [vmem:[%s247] sm:$0x3]
        %v249 = vld [vmem:[%s191] sm:$0x3]
        %s250 = scalar_lea.vmem %s191, 2 [#allocation5]
        %v251 = vld [vmem:[%s250] sm:$0x3]
        %s252 = scalar_lea.vmem %s191, 4 [#allocation5]
        %v253 = vld [vmem:[%s252] sm:$0x3]
        %s254 = scalar_lea.vmem %s191, 6 [#allocation5]
        %v255 = vld [vmem:[%s254] sm:$0x3]
        %vm256 = vcmp.gt.f32.partialorder %v249, 0.0
        %v257 = vadd.f32 %v244, %v248
        %v258 = vadd.f32 %v242, %v246
        %v259 = vmul.f32 %v257, %v258
        %v260 = vadd.f32 %v251, %v255
        %v261 = vadd.f32 %v249, %v253
        %v262 = vmul.f32 %v260, %v261
        %v263 = vmin.f32 %v242, %v249
        %v264 = vmin.f32 %v246, %v253
        %v265 = vadd.f32 %v263, %v264
        %v266 = vmin.f32 %v244, %v251
        %v267 = vmin.f32 %v248, %v255
        %v268 = vadd.f32 %v266, %v267
        %v269 = vmul.f32 %v265, %v268
        %v270 = vadd.f32 %v259, %v262
        %v271 = vsub.f32 %v270, %v269
        %v272 = vadd.f32 %v271, 1e-09
        %v273 = vrcp.pop %v272
        %v274 = vmul.f32 %v269, %v273
        %v275 = vmax.f32 %v242, %v249
        %v276 = vmax.f32 %v246, %v253
        %v277 = vadd.f32 %v275, %v276
        %v278 = vmax.f32 %v244, %v251
        %v279 = vmax.f32 %v248, %v255
        %v280 = vadd.f32 %v278, %v279
        %v281 = vmul.f32 %v277, %v280
        %v282 = vsub.f32 %v281, %v271
        %v283 = vadd.f32 %v281, 1e-09
        %v284 = vrcp.pop %v283
        %v285 = vmul.f32 %v282, %v284
        %v286 = vsub.f32 %v274, %v285
        %v287 = vsub.f32 1.0, %v286
        %v288 = vld [vmem:[#allocation2] sm:$0x3]
        %v289 = vadd.f32 %v288, %v241
        %290 = vst [vmem:[#allocation2] sm:$0x3] %v289
        %s291 = scalar_lea.vmem [#allocation2], 2
        %v292 = vld [vmem:[%s291] sm:$0x3]
        %v293 = vsel %vm256, %v287, 0.0
        %v294 = vadd.f32 %v292, %v293
        %295 = vst [vmem:[%s291] sm:$0x3] %v294
        %s296 = scalar_lea.vmem [#allocation2], 4
        %v297 = vld [vmem:[%s296] sm:$0x3]
        %v298 = vsel %vm256, 1.0, 0.0
        %v299 = vadd.f32 %v297, %v298
        %300 = vst [vmem:[%s296] sm:$0x3] %v299
        // Predicated region
        $region41: #{tpu_custom_call.1} parent=27 // pred_check
          %p301 = pneg %p220
        $region42: #{tpu_custom_call.1} parent=27 // pred_check_branch
          %303 = sbr.rel (%p301) target = $region44
        $region43: #{tpu_custom_call.1} parent=27 // pred_region
          %v304 = vld [vmem:[#allocation2] sm:$0x3]
          %vm305 = vcmask 1041408
          %v306 = vsel %vm305, %v304, 0.0
          %v307 = vrot.slane %v306, 4
          %v308 = vadd.f32 %v306, %v307
          %v309 = vrot.slane %v308, 2
          %v310 = vadd.f32 %v308, %v309
          %v311 = vrot.slane %v310, 1
          %v312 = vadd.f32 %v310, %v311
          %313 = vst [vmem:[%s219] sm:$0x1] %v312
          %v314 = vld [vmem:[%s291] sm:$0x3]
          %v315 = vsel %vm305, %v314, 0.0
          %v316 = vrot.slane %v315, 4
          %v317 = vadd.f32 %v315, %v316
          %v318 = vrot.slane %v317, 2
          %v319 = vadd.f32 %v317, %v318
          %v320 = vrot.slane %v319, 1
          %v321 = vadd.f32 %v319, %v320
          %322 = vst [vmem:[%s219 + $0x1] sm:$0x1] %v321
          %v323 = vld [vmem:[%s296] sm:$0x3]
          %v324 = vsel %vm305, %v323, 0.0
          %v325 = vrot.slane %v324, 4
          %v326 = vadd.f32 %v324, %v325
          %v327 = vrot.slane %v326, 2
          %v328 = vadd.f32 %v326, %v327
          %v329 = vrot.slane %v328, 1
          %v330 = vadd.f32 %v328, %v329
          %331 = vst [vmem:[%s219 + $0x2] sm:$0x1] %v330
        $region44: #{tpu_custom_call.1} parent=27 // pred_fallthru
          _
        %p332 = scmp.lt.s32.totalorder %s23, 1
        %s333 = scalar_select %p332, %s23, 1
        %s334 = smul.addr %s333, 4
        %s335 = scalar_lea.vmem %s2, %s334
        // Predicated region
        $region45: #{tpu_custom_call.1} parent=27 // pred_check
          %p336 = pneg %p105
        $region46: #{tpu_custom_call.1} parent=27 // pred_check_branch
          %338 = sbr.rel (%p336) target = $region48
        $region47: #{tpu_custom_call.1} parent=27 // pred_region
          _
        $region48: #{tpu_custom_call.1} parent=27 // pred_fallthru
          _
      $region28: #{tpu_custom_call.1} parent=5 // pred_fallthru
        _
      %p339 = scmp.le.s32.totalorder 2, %s14
      // Predicated region
      $region49: #{tpu_custom_call.1} parent=5 // pred_check
        %p340 = pneg %p339
      $region50: #{tpu_custom_call.1} parent=5 // pred_check_branch
        %342 = sbr.rel (%p340) target = $region52
      $region51: #{tpu_custom_call.1} parent=5 // pred_region
        %s343 = ssub.s32 %s14, 2
        // Predicated region
        $region53: #{tpu_custom_call.1} parent=51 // pred_check
          %p344 = pneg %p111
        $region54: #{tpu_custom_call.1} parent=51 // pred_check_branch
          %346 = sbr.rel (%p344) target = $region56
        $region55: #{tpu_custom_call.1} parent=51 // pred_region
          %p347 = scmp.lt.s32.totalorder %s25, 1
          %s348 = scalar_select %p347, %s25, 1
          %s349 = smul.addr %s348, 4
          %s350 = scalar_lea.vmem %s2, %s349
        $region56: #{tpu_custom_call.1} parent=51 // pred_fallthru
          _
      $region52: #{tpu_custom_call.1} parent=5 // pred_fallthru
        _
    $region6: #{tpu_custom_call.1} parent=1 // loop_footer
      %s18 = sadd.s32 1, %s14
    $region7: #{tpu_custom_call.1} parent=1 // loop_footer_branch
      %13 = sbr.rel target = $region3
    $region8: #{tpu_custom_call.1} parent=1 // loop_exit
      _
    %351 = vsyncpa [#allocation4], 1
    %s352 = scalar_lea.sflag [#allocation4], 1
    %353 = vsyncpa %s352, 1
    %354 = vsyncpa [#allocation6], 1
    %s355 = scalar_lea.sflag [#allocation6], 1
    %356 = vsyncpa %s355, 1

</llo_original>
